<compile_context>
chip_gen: v6e
topology: v6e:2x2x1
jax: 0.10.0
libtpu: 0.0.40
codegen_flags: <defaults>
</compile_context>

<pallas_src>
import jax
import jax.numpy as jnp
from jax.experimental import pallas as pl
from jax.experimental.pallas import tpu as pltpu

_LANES = 128
_SUBLANES = 8


def _make_mse_partial_kernel(rows, tile_rows, total_blocks, blocks_per_core,
                             needs_mask):
    """Per-core partial sum of squared differences over (rows, 128)."""
    groups = tile_rows // _SUBLANES

    def _accumulate(x, t, acc_ref, mask=None):
        d = x.astype(jnp.float32) - t.astype(jnp.float32)
        if mask is not None:
            d = jnp.where(mask, d, 0.0)          # mask before squaring
        sq = d * d
        # Fold (tile_rows,128) into the small (8,128) accumulator with pure VPU
        # adds; the reshape is sublane-tile aligned (free view), no XLU reduce.
        acc_ref[...] += jnp.sum(sq.reshape(groups, _SUBLANES, _LANES), axis=0)

    def kernel(x_ref, t_ref, out_ref, acc_ref):
        c = pl.program_id(0)          # core / split index ("parallel")
        i = pl.program_id(1)          # block index within this core ("arbitrary")

        @pl.when(i == 0)
        def _():
            acc_ref[...] = jnp.zeros_like(acc_ref)

        x = x_ref[...]
        t = t_ref[...]

        if needs_mask:
            gb = c * blocks_per_core + i          # global block index
            is_edge = gb >= (total_blocks - 1)    # partial tail or clamped dummy

            @pl.when(jnp.logical_not(is_edge))
            def _():
                _accumulate(x, t, acc_ref)

            @pl.when(is_edge)
            def _():
                local = jax.lax.broadcasted_iota(jnp.int32, (tile_rows, _LANES), 0)
                mask = (gb * tile_rows + local) < rows
                _accumulate(x, t, acc_ref, mask)
        else:
            _accumulate(x, t, acc_ref)

        @pl.when(i == pl.num_programs(1) - 1)
        def _():
            out_ref[0] = acc_ref[...]             # per-core output slot

    return kernel


def _auto_config():
    """Best-effort chip detection -> (tile_bytes per input block, num_splits)."""
    kind = ""
    try:
        kind = (jax.devices()[0].device_kind or "").lower()
    except Exception:
        pass
    if "v7" in kind:
        # 3.2 TB/s HBM per TC: larger tiles so step overhead stays hidden, and a
        # 2-way TensorCore split of the row space.
        return 4 * 1024 * 1024, 2
    return 2 * 1024 * 1024, 1


def content_loss_forward(x, target, *, tile_bytes=None, num_splits=None):
    """Replicates ContentLoss.forward: loss = mse_loss(x, target); returns (x, loss)."""
    assert x.shape == target.shape, "input and target must have identical shapes"
    n_total = x.size

    auto_tile_bytes, auto_splits = _auto_config()
    if tile_bytes is None:
        tile_bytes = auto_tile_bytes
    if num_splits is None:
        num_splits = auto_splits

    flat_x = x.reshape(-1)
    flat_t = target.reshape(-1)

    rows = n_total // _LANES
    rem = n_total - rows * _LANES

    # Sub-128-element remainder: tiny wrapper-side reduction (rare path). Avoids
    # concatenating/padding full copies of both inputs.
    if rem:
        dx = (flat_x[rows * _LANES:].astype(jnp.float32)
              - flat_t[rows * _LANES:].astype(jnp.float32))
        tail_sum = jnp.sum(dx * dx)
    else:
        tail_sum = jnp.float32(0.0)

    if rows == 0:
        return x, tail_sum / jnp.float32(n_total)

    if rem:
        # TODO(synk): a prefix slice still materializes one copy of the bulk; a
        # fully zero-copy ragged path would need manual 1-D DMA via pl.ANY.
        bulk_x = jax.lax.slice(flat_x, (0,), (rows * _LANES,))
        bulk_t = jax.lax.slice(flat_t, (0,), (rows * _LANES,))
    else:
        bulk_x, bulk_t = flat_x, flat_t

    x2 = bulk_x.reshape(rows, _LANES)     # free (metadata) reshape
    t2 = bulk_t.reshape(rows, _LANES)

    itemsize = jnp.dtype(x.dtype).itemsize
    # Sublane alignment: 8 for 4-byte dtypes, 16 for bf16/fp16, 32 for 1-byte.
    sub = max(_SUBLANES, 32 // itemsize)
    tile_rows = max(sub, (tile_bytes // (_LANES * itemsize)) // sub * sub)
    rows_up = ((rows + sub - 1) // sub) * sub
    tile_rows = max(sub, min(tile_rows, rows_up))

    total_blocks = pl.cdiv(rows, tile_rows)
    num_splits = max(1, min(num_splits, total_blocks))
    blocks_per_core = pl.cdiv(total_blocks, num_splits)
    padded_blocks = num_splits * blocks_per_core
    needs_mask = (rows % tile_rows != 0) or (padded_blocks != total_blocks)

    if padded_blocks == total_blocks:
        def in_map(c, i):
            return (c * blocks_per_core + i, 0)
    else:
        # Clamp dummy trailing blocks to the last real block (stays in-bounds);
        # their contribution is fully masked inside the kernel.
        def in_map(c, i):
            return (jnp.minimum(c * blocks_per_core + i, total_blocks - 1), 0)

    kernel = _make_mse_partial_kernel(rows, tile_rows, total_blocks,
                                      blocks_per_core, needs_mask)

    block_bytes = tile_rows * _LANES * itemsize
    # 2 inputs x 2 pipeline buffers x block + small out/acc, plus headroom.
    vmem_limit = int(max(32 * 1024 * 1024, 4 * block_bytes + 4 * 1024 * 1024))

    partials = pl.pallas_call(
        kernel,
        out_shape=jax.ShapeDtypeStruct((num_splits, _SUBLANES, _LANES), jnp.float32),
        grid_spec=pltpu.PrefetchScalarGridSpec(
            num_scalar_prefetch=0,
            grid=(num_splits, blocks_per_core),
            in_specs=[
                pl.BlockSpec((tile_rows, _LANES), in_map),
                pl.BlockSpec((tile_rows, _LANES), in_map),
            ],
            out_specs=pl.BlockSpec((1, _SUBLANES, _LANES), lambda c, i: (c, 0, 0)),
            scratch_shapes=[pltpu.VMEM((_SUBLANES, _LANES), jnp.float32)],
        ),
        compiler_params=pltpu.CompilerParams(
            dimension_semantics=("parallel", "arbitrary"),
            vmem_limit_bytes=vmem_limit,
        ),
    )(x2, t2)

    sq_sum = jnp.sum(partials) + tail_sum
    loss = sq_sum / jnp.float32(n_total)

    # ContentLoss.forward returns the input unchanged and stashes self.loss;
    # here we return both explicitly (no module state in JAX).
    return x, loss


if __name__ == "__main__":
    key = jax.random.PRNGKey(0)
    k_x, k_t = jax.random.split(key)

    # NCHW, small shapes: batch=2, channels=4, spatial=16x16
    shape = (2, 4, 16, 16)
    x = jax.random.normal(k_x, shape, dtype=jnp.float32)
    target = jax.random.normal(k_t, shape, dtype=jnp.float32)  # "detached" target

    out, loss = content_loss_forward(x, target)
    out = jax.block_until_ready(out)
    loss = jax.block_until_ready(loss)

    ref_loss = jnp.mean((x - target) ** 2)
    assert jnp.allclose(loss, ref_loss, rtol=1e-6, atol=1e-6), (loss, ref_loss)
    assert jnp.array_equal(out, x)  # forward returns input unchanged

    # Non-128-divisible element count (wrapper-side tail), multi-block, forced
    # 2-way core split with a masked partial last block.
    shape2 = (3, 5, 7, 11)  # 1155 elements -> 9 full rows + 3-element tail
    x2 = jax.random.normal(k_x, shape2, dtype=jnp.float32)
    t2 = jax.random.normal(k_t, shape2, dtype=jnp.float32)
    _, loss2 = content_loss_forward(x2, t2, tile_bytes=8 * 128 * 4, num_splits=2)
    loss2 = jax.block_until_ready(loss2)
    ref_loss2 = jnp.mean((x2 - t2) ** 2)
    assert jnp.allclose(loss2, ref_loss2, rtol=1e-6, atol=1e-6), (loss2, ref_loss2)

    # Uneven block/core split: 17 rows -> 3 blocks over 2 cores (one clamped
    # dummy block, fully masked) plus a partial last real block.
    shape3 = (2, 17, 8, 8)  # 2176 elements -> 17 rows of 128
    x3 = jax.random.normal(k_x, shape3, dtype=jnp.float32)
    t3 = jax.random.normal(k_t, shape3, dtype=jnp.float32)
    _, loss3 = content_loss_forward(x3, t3, tile_bytes=8 * 128 * 4, num_splits=2)
    loss3 = jax.block_until_ready(loss3)
    ref_loss3 = jnp.mean((x3 - t3) ** 2)
    assert jnp.allclose(loss3, ref_loss3, rtol=1e-6, atol=1e-6), (loss3, ref_loss3)

    print("KERNEL_OK")
</pallas_src>

<mosaic_0001>
module attributes {stable_mosaic.version = 11 : i64} {
  func.func @kernel(%arg0: i32, %arg1: i32, %arg2: memref<16x128xf32, #tpu.memory_space<vmem>>, %arg3: memref<16x128xf32, #tpu.memory_space<vmem>>, %arg4: memref<1x8x128xf32, #tpu.memory_space<vmem>>, %arg5: memref<8x128xf32, #tpu.memory_space<vmem>>) attributes {dimension_semantics = [#tpu.dimension_semantics<parallel>, #tpu.dimension_semantics<arbitrary>], iteration_bounds = array<i64: 1, 1>, scalar_prefetch = 0 : i64, scratch_operands = 1 : i64, tpu.core_type = #tpu.core_type<tc>, window_params = [{transform_indices = @transform_0, window_bounds = array<i64: 16, 128>}, {transform_indices = @transform_1, window_bounds = array<i64: 16, 128>}, {transform_indices = @transform_2, window_bounds = array<i64: 1, 8, 128>}]} {
    %c0_i32 = arith.constant 0 : i32
    %0 = arith.cmpi eq, %arg1, %c0_i32 : i32
    %1 = arith.extui %0 : i1 to i32
    %c0_i32_0 = arith.constant 0 : i32
    %2 = arith.cmpi ne, %1, %c0_i32_0 : i32
    scf.if %2 {
      %cst_10 = arith.constant 0.000000e+00 : f32
      %15 = vector.broadcast %cst_10 : f32 to vector<8x128xf32>
      %c0_11 = arith.constant 0 : index
      %c0_12 = arith.constant 0 : index
      %16 = vector.load %arg5[%c0_11, %c0_12] : memref<8x128xf32, #tpu.memory_space<vmem>>, vector<8x128xf32>
      tpu.vector_store %arg5[%c0_11, %c0_12], %15 {strides = array<i32>} : memref<8x128xf32, #tpu.memory_space<vmem>>, vector<8x128xf32>,
    } else {
    }
    %c0 = arith.constant 0 : index
    %c0_1 = arith.constant 0 : index
    %3 = vector.load %arg2[%c0, %c0_1] : memref<16x128xf32, #tpu.memory_space<vmem>>, vector<16x128xf32>
    %c0_2 = arith.constant 0 : index
    %c0_3 = arith.constant 0 : index
    %4 = vector.load %arg3[%c0_2, %c0_3] : memref<16x128xf32, #tpu.memory_space<vmem>>, vector<16x128xf32>
    %5 = arith.subf %3, %4 : vector<16x128xf32>
    %6 = arith.mulf %5, %5 : vector<16x128xf32>
    %c0_4 = arith.constant 0 : index
    %c0_5 = arith.constant 0 : index
    %7 = vector.load %arg5[%c0_4, %c0_5] : memref<8x128xf32, #tpu.memory_space<vmem>>, vector<8x128xf32>
    %8 = vector.shape_cast %6 : vector<16x128xf32> to vector<2x8x128xf32>
    %cst = arith.constant dense<0.000000e+00> : vector<8x128xf32>
    %9 = vector.multi_reduction <add>, %8, %cst [0] : vector<2x8x128xf32> to vector<8x128xf32>
    %10 = arith.addf %7, %9 : vector<8x128xf32>
    %c0_6 = arith.constant 0 : index
    %c0_7 = arith.constant 0 : index
    %11 = vector.load %arg5[%c0_6, %c0_7] : memref<8x128xf32, #tpu.memory_space<vmem>>, vector<8x128xf32>
    tpu.vector_store %arg5[%c0_6, %c0_7], %10 {strides = array<i32>} : memref<8x128xf32, #tpu.memory_space<vmem>>, vector<8x128xf32>,
    %c0_i32_8 = arith.constant 0 : i32
    %12 = arith.cmpi eq, %arg1, %c0_i32_8 : i32
    %13 = arith.extui %12 : i1 to i32
    %c0_i32_9 = arith.constant 0 : i32
    %14 = arith.cmpi ne, %13, %c0_i32_9 : i32
    scf.if %14 {
      %c0_10 = arith.constant 0 : index
      %c0_11 = arith.constant 0 : index
      %15 = vector.load %arg5[%c0_10, %c0_11] : memref<8x128xf32, #tpu.memory_space<vmem>>, vector<8x128xf32>
      %c0_12 = arith.constant 0 : index
      %c0_13 = arith.constant 0 : index
      %c0_14 = arith.constant 0 : index
      %16 = vector.load %arg4[%c0_12, %c0_13, %c0_14] : memref<1x8x128xf32, #tpu.memory_space<vmem>>, vector<1x8x128xf32>
      %17 = vector.shape_cast %16 : vector<1x8x128xf32> to vector<8x128xf32>
      %18 = vector.shape_cast %15 : vector<8x128xf32> to vector<1x8x128xf32>
      tpu.vector_store %arg4[%c0_12, %c0_13, %c0_14], %18 {strides = array<i32>} : memref<1x8x128xf32, #tpu.memory_space<vmem>>, vector<1x8x128xf32>,
    } else {
    }
    return
  }
  func.func @transform_0(%arg0: i32, %arg1: i32) -> (i32, i32) {
    %c1_i32 = arith.constant 1 : i32
    %0 = arith.muli %arg0, %c1_i32 : i32
    %1 = arith.addi %0, %arg1 : i32
    %c0_i32 = arith.constant 0 : i32
    %c0_i32_0 = arith.constant 0 : i32
    return %1, %c0_i32 : i32, i32
  }
  func.func @transform_1(%arg0: i32, %arg1: i32) -> (i32, i32) {
    %c1_i32 = arith.constant 1 : i32
    %0 = arith.muli %arg0, %c1_i32 : i32
    %1 = arith.addi %0, %arg1 : i32
    %c0_i32 = arith.constant 0 : i32
    %c0_i32_0 = arith.constant 0 : i32
    return %1, %c0_i32 : i32, i32
  }
  func.func @transform_2(%arg0: i32, %arg1: i32) -> (i32, i32, i32) {
    %c0_i32 = arith.constant 0 : i32
    %c0_i32_0 = arith.constant 0 : i32
    %c0_i32_1 = arith.constant 0 : i32
    return %arg0, %c0_i32, %c0_i32_0 : i32, i32, i32
  }
}

</mosaic_0001>

<llo_original>
// kernel: tpu_custom_call.1
$region0: #{tpu_custom_call.1}
  #allocation0 [shape = 'u32[]', space=smem, size = 0x4, offset = 0x4, fixed_abs, tag = 'smem constant byte address 0x4 - core index']
  #allocation1 [shape = 'u32[144,128]{1,0:T(1,128)}', space=vmem, size = 0x12000, scoped, tag = 'internal scratch']
  #allocation2 [shape = 'f32[8,128]{1,0:T(8,128)}', space=vmem, size = 0x1000, scoped, tag = 'scratch operand']
  %s0 = inlined_call_operand.hbm [shape: f32[16,128], index: 0, kind: input, shape index: {}]
  %s1 = inlined_call_operand.hbm [shape: f32[16,128], index: 1, kind: input, shape index: {}]
  %s2 = inlined_call_operand.hbm [shape: f32[1,8,128], index: 2, kind: output, shape index: {}]
  %s3 = sld [smem:[#allocation0]]
  $region34: #{tpu_custom_call.1} parent=0
    _
  %s5 = ssub.s32 1, %s3
  %s6 = scalar_select 0, %s5, %s3
  $region1: #{tpu_custom_call.1} parent=0
    #allocation3 [shape = 'u8[8192]{0}', space=vmem, size = 0x2000, scoped, tag = 'input window, operand 0, single buffered']
    #allocation4 [shape = 's32[1]{0}', space=sflag, size = 0x4, scoped, tag = 'scoped memory for tpu_custom_call.1']
    #allocation5 [shape = 's32[1]{0}', space=sflag, size = 0x4, scoped, tag = 'scoped memory for tpu_custom_call.1']
    #allocation6 [shape = 'u8[8192]{0}', space=vmem, size = 0x2000, scoped, tag = 'input window, operand 1, single buffered']
    #allocation7 [shape = 's32[1]{0}', space=sflag, size = 0x4, scoped, tag = 'scoped memory for tpu_custom_call.1']
    #allocation8 [shape = 'u8[4096]{0}', space=vmem, size = 0x1000, scoped, tag = 'output window, operand 0, single buffered']
    %7 = vsyncpa [#allocation4], 0
    %8 = vsyncpa [#allocation7], 0
    %9 = vsyncpa [#allocation5], 0
    // Predicated region
    $region2: #{tpu_custom_call.1} parent=1 // pred_check
      _
    $region3: #{tpu_custom_call.1} parent=1 // pred_check_branch
      %11 = sbr.rel (0) target = $region5
    $region4: #{tpu_custom_call.1} parent=1 // pred_region
      %s12 = sadd.s32 0, 0
      %s13 = smul.u32 2, %s12
      %s15 = ssub.s32 256, 256
      %16 = vsyncadd [#allocation4], %s15
      %s17 = smul.addr %s13, 128
      %s18 = scalar_lea.hbm %s0, %s17
      %s19 = sshll.u32 [#allocation3], 4
      %s20 = int_to_ptr.vmem [resolvable:$true] %s19
      %25 = dma.hbm_to_vmem [thread:$0]  %s18, 256, %s20, [#allocation4], 128, 128, 8
    $region5: #{tpu_custom_call.1} parent=1 // pred_fallthru
      _
    // Predicated region
    $region6: #{tpu_custom_call.1} parent=1 // pred_check
      _
    $region7: #{tpu_custom_call.1} parent=1 // pred_check_branch
      %27 = sbr.rel (0) target = $region9
    $region8: #{tpu_custom_call.1} parent=1 // pred_region
      %s28 = sadd.s32 0, 0
      %s29 = smul.u32 2, %s28
      %s31 = ssub.s32 256, 256
      %32 = vsyncadd [#allocation7], %s31
      %s33 = smul.addr %s29, 128
      %s34 = scalar_lea.hbm %s1, %s33
      %s35 = sshll.u32 [#allocation6], 4
      %s36 = int_to_ptr.vmem [resolvable:$true] %s35
      %41 = dma.hbm_to_vmem [thread:$0]  %s34, 256, %s36, [#allocation7], 128, 128, 8
    $region9: #{tpu_custom_call.1} parent=1 // pred_fallthru
      _
    // Predicated region
    $region10: #{tpu_custom_call.1} parent=1 // pred_check
      _
    $region11: #{tpu_custom_call.1} parent=1 // pred_check_branch
      %43 = sbr.rel (0) target = $region13
    $region12: #{tpu_custom_call.1} parent=1 // pred_region
      %44 = dma.done [#allocation4], 256
    $region13: #{tpu_custom_call.1} parent=1 // pred_fallthru
      _
    // Predicated region
    $region14: #{tpu_custom_call.1} parent=1 // pred_check
      _
    $region15: #{tpu_custom_call.1} parent=1 // pred_check_branch
      %46 = sbr.rel (0) target = $region17
    $region16: #{tpu_custom_call.1} parent=1 // pred_region
      %47 = dma.done [#allocation7], 256
    $region17: #{tpu_custom_call.1} parent=1 // pred_fallthru
      _
    %s48 = sadd.s32 0, 0
    %s49 = smul.u32 2, %s48
    %s50 = sadd.s32 0, 0
    %s51 = smul.u32 2, %s50
    %p52 = scmp.eq.s32.totalorder 0, 0
    // Predicated region
    $region18: #{tpu_custom_call.1} parent=1 // pred_check
      %p53 = pneg %p52
    $region19: #{tpu_custom_call.1} parent=1 // pred_check_branch
      %55 = sbr.rel (%p53) target = $region21
    $region20: #{tpu_custom_call.1} parent=1 // pred_region
      %56 = vst [vmem:[#allocation2] sm:$0xff] 0.0
    $region21: #{tpu_custom_call.1} parent=1 // pred_fallthru
      _
    %v57 = vld [vmem:[#allocation3] sm:$0xff]
    %v58 = vld [vmem:[#allocation3 + $0x8] sm:$0xff]
    %v59 = vld [vmem:[#allocation6] sm:$0xff]
    %v60 = vld [vmem:[#allocation6 + $0x8] sm:$0xff]
    %v61 = vsub.f32 %v57, %v59
    %v62 = vsub.f32 %v58, %v60
    %v63 = vmul.f32 %v61, %v61
    %v64 = vmul.f32 %v62, %v62
    %v65 = vld [vmem:[#allocation2] sm:$0xff]
    %v66 = vadd.f32 %v63, %v64
    %v67 = vadd.f32 %v65, %v66
    %68 = vst [vmem:[#allocation2] sm:$0xff] %v67
    // Predicated region
    $region22: #{tpu_custom_call.1} parent=1 // pred_check
      %p69 = pneg %p52
    $region23: #{tpu_custom_call.1} parent=1 // pred_check_branch
      %71 = sbr.rel (%p69) target = $region25
    $region24: #{tpu_custom_call.1} parent=1 // pred_region
      %v72 = vld [vmem:[#allocation2] sm:$0xff]
      %73 = vst [vmem:[#allocation8] sm:$0xff] %v72
    $region25: #{tpu_custom_call.1} parent=1 // pred_fallthru
      _
    // Predicated region
    $region26: #{tpu_custom_call.1} parent=1 // pred_check
      _
    $region27: #{tpu_custom_call.1} parent=1 // pred_check_branch
      %75 = sbr.rel (0) target = $region29
    $region28: #{tpu_custom_call.1} parent=1 // pred_region
      %s77 = ssub.s32 128, 128
      %78 = vsyncadd [#allocation5], %s77
      %s80 = sshll.u32 [#allocation8], 4
      %s81 = int_to_ptr.vmem [resolvable:$true] %s80
      %83 = dma.vmem_to_hbm [thread:$0]  %s81, 128, %s2, [#allocation5]
    $region29: #{tpu_custom_call.1} parent=1 // pred_fallthru
      _
    // Predicated region
    $region30: #{tpu_custom_call.1} parent=1 // pred_check
      _
    $region31: #{tpu_custom_call.1} parent=1 // pred_check_branch
      %85 = sbr.rel (0) target = $region33
    $region32: #{tpu_custom_call.1} parent=1 // pred_region
      %86 = dma.done [#allocation5], 128
    $region33: #{tpu_custom_call.1} parent=1 // pred_fallthru
      _
    %87 = vsyncpa [#allocation4], 1
    %88 = vsyncpa [#allocation7], 1
    %89 = vsyncpa [#allocation5], 1

</llo_original>
